<compile_context>
chip_gen: v7x
topology: tpu7x:2x2x1
jax: 0.10.0
libtpu: 0.0.40
codegen_flags: <defaults>
</compile_context>

<pallas_src>
import math
import functools

import jax
import jax.numpy as jnp
from jax.experimental import pallas as pl
from jax.experimental.pallas import tpu as pltpu


# ---------------------------------------------------------------------------
# Blocking-factor logic copied from IpexMLPLinear (output-layout blocking only)
# ---------------------------------------------------------------------------
def get_blocking_factor(dim_size, default_blocking=None):
    blocking_prio_list = [64, 48, 32, 50]
    if default_blocking:
        blocking_prio_list = [default_blocking] + blocking_prio_list
    for bs in blocking_prio_list:
        if dim_size % bs == 0:
            return bs
    return dim_size


# ---------------------------------------------------------------------------
# Padding + tile selection
# ---------------------------------------------------------------------------
_TM_OPTS = (2048, 1024, 512, 256, 128, 64, 48, 32, 16, 8)
_TN_OPTS = (2048, 1024, 512, 256, 128)
_TK_OPTS = (512, 256, 128)


def _round_up(x, m):
    return ((x + m - 1) // m) * m


def _pad_N(N, gran=8):
    # keep N exact if a reasonable tile already divides it, otherwise pad
    for t in _TM_OPTS:
        if t % gran == 0 and N % t == 0:
            if t >= 128 or N <= 16 * t:
                return N
            break
    g = gran if N < 128 else (128 if N < 2048 else 512)
    return _round_up(N, g)


def _pad_K(K):
    for t in _TN_OPTS:
        if K % t == 0:
            return K
    return _round_up(K, 128 if K < 2048 else 512)


def _pad_C(C):
    if C <= 512:
        return C          # a full-C reduction block is always a legal block shape
    for t in _TK_OPTS:
        if C % t == 0:
            return C
    return _round_up(C, 128)


def _vmem_budget():
    """Generation-aware tile budget and explicit scoped-VMEM limit."""
    try:
        phys = int(pltpu.get_tpu_info().vmem_capacity_bytes)
    except Exception:
        phys = 64 * 1024 * 1024          # conservative fallback (v7x-sized VMEM)
    budget = (2 * phys) // 5             # ~51 MiB on v5e/v6e (128 MiB), ~25 MiB on v7x
    limit = min((3 * phys) // 4, budget + (16 << 20))
    return budget, limit


def _pick_tiles(N_p, K_p, C_p, x_bytes, w_bytes, out_bytes, budget, tm_gran=8):
    tm_opts = [t for t in _TM_OPTS if N_p % t == 0 and t % tm_gran == 0] or [N_p]
    tn_opts = [t for t in _TN_OPTS if K_p % t == 0] or [K_p]
    tk_opts = [t for t in _TK_OPTS if C_p % t == 0] or [C_p]

    best, best_score = None, (-1.0, -1)
    for tm in tm_opts:
        for tn in tn_opts:
            for tk in tk_opts:
                vmem = (2 * tm * tk * x_bytes            # x tile, double-buffered
                        + 2 * tk * tn * w_bytes          # weight tile
                        + 2 * tm * tn * out_bytes        # output tile
                        + tm * tn * 4                    # f32 accumulator scratch
                        + 2 * tn * 4)                    # bias tile
                if vmem > budget:
                    continue
                # maximize arithmetic intensity ~ tm*tn/(tm+tn); prefer larger tk
                score = (tm * tn / (tm + tn), tk)
                if score > best_score:
                    best_score, best = score, (tm, tn, tk)
    if best is None:
        best = (tm_opts[-1], tn_opts[-1], tk_opts[-1])   # smallest combo, tiny VMEM
    tm, tn, tk = best

    # v7x has 2 TensorCores sharded over "parallel" axes: guarantee >= 2 steps
    if (N_p // tm) * (K_p // tn) < 2:
        if tn % 256 == 0:
            tn //= 2
        elif tm % (2 * tm_gran) == 0:
            tm //= 2
    return tm, tn, tk


# ---------------------------------------------------------------------------
# Pallas kernel: tiled GEMM with f32 VMEM accumulator; bias + activation fused
# into the final reduction step; output tile written exactly once, already in
# the target dtype.
# ---------------------------------------------------------------------------
def _mlp_fc_kernel(*refs, act_type, has_bias, compute_dtype, k_steps):
    n_in = 3 if has_bias else 2
    x_ref, wT_ref = refs[0], refs[1]
    b_ref = refs[2] if has_bias else None
    o_ref = refs[n_in]
    acc_ref = refs[n_in + 1] if k_steps > 1 else None

    k = pl.program_id(2)

    x = x_ref[...]
    w = wT_ref[...]
    if compute_dtype is not None:
        # per-tile cast (hidden under the MXU) instead of a wrapper-side HBM pass
        x = x.astype(compute_dtype)
        w = w.astype(compute_dtype)
    part_sum = jnp.dot(x, w, preferred_element_type=jnp.float32)

    if k_steps > 1:
        @pl.when(k == 0)
        def _():
            acc_ref[...] = part_sum

        @pl.when(jnp.logical_and(k > 0, k < k_steps - 1))
        def _():
            acc_ref[...] += part_sum

    @pl.when(k == k_steps - 1)
    def _():
        out = part_sum if k_steps == 1 else acc_ref[...] + part_sum
        if has_bias:
            out = out + b_ref[...]          # (1, tn) broadcasts over rows
        if act_type == 1:                   # relu
            out = jnp.maximum(out, 0.0)
        elif act_type == 2:                 # sigmoid (EUP)
            out = jax.nn.sigmoid(out)
        o_ref[...] = out.astype(o_ref.dtype)


def mlp_fc(x, weightT_p, bias2d_p=None, *, out_features=None, act_type=0,
           compute_dtype=None, out_dtype=None):
    """out[N, K] = act(x[N, C] @ weightT[C, K] + bias[K]); f32 accumulation."""
    N, C = x.shape
    C_p, K_p = weightT_p.shape
    K = out_features if out_features is not None else K_p
    out_dtype = jnp.dtype(out_dtype if out_dtype is not None else x.dtype)
    has_bias = bias2d_p is not None

    x_bytes = jnp.dtype(x.dtype).itemsize
    w_bytes = jnp.dtype(weightT_p.dtype).itemsize
    out_bytes = out_dtype.itemsize
    tm_gran = 16 if out_bytes == 2 else 8

    # zero-pad x to shapes that admit (8,128)-aligned tiles (weight/bias were
    # padded once at module init).  For already-nice shapes this is a no-op.
    N_p = _pad_N(N, tm_gran)
    if (N_p, C_p) != (N, C):
        x = jnp.pad(x, ((0, N_p - N), (0, C_p - C)))

    budget, vmem_limit = _vmem_budget()
    tm, tn, tk = _pick_tiles(N_p, K_p, C_p, x_bytes, w_bytes, out_bytes,
                             budget, tm_gran)
    k_steps = C_p // tk
    grid = (N_p // tm, K_p // tn, k_steps)

    kernel = functools.partial(_mlp_fc_kernel, act_type=act_type,
                               has_bias=has_bias, compute_dtype=compute_dtype,
                               k_steps=k_steps)

    in_specs = [
        pl.BlockSpec((tm, tk), lambda i, j, k: (i, k)),   # x
        pl.BlockSpec((tk, tn), lambda i, j, k: (k, j)),   # weight.T
    ]
    args = [x, weightT_p]
    if has_bias:
        in_specs.append(pl.BlockSpec((1, tn), lambda i, j, k: (0, j)))
        args.append(bias2d_p)

    # TODO(synk): if still HBM-bound on v6e, sweep pipeline_mode=pl.Buffered(3)
    # on the x / weight BlockSpecs (left at the default 2 for robustness).

    scratch = [pltpu.VMEM((tm, tn), jnp.float32)] if k_steps > 1 else []

    cost = pl.CostEstimate(
        flops=2 * N_p * K_p * C_p,
        transcendentals=N_p * K_p if act_type == 2 else 0,
        bytes_accessed=(grid[1] * N_p * C_p * x_bytes       # x re-read per j
                        + grid[0] * C_p * K_p * w_bytes     # w re-read per i
                        + N_p * K_p * out_bytes
                        + (grid[0] * K_p * 4 if has_bias else 0)),
    )

    out = pl.pallas_call(
        kernel,
        out_shape=jax.ShapeDtypeStruct((N_p, K_p), out_dtype),
        grid_spec=pltpu.PrefetchScalarGridSpec(
            num_scalar_prefetch=0,
            grid=grid,
            in_specs=in_specs,
            out_specs=pl.BlockSpec((tm, tn), lambda i, j, k: (i, j)),
            scratch_shapes=scratch,
        ),
        compiler_params=pltpu.CompilerParams(
            dimension_semantics=("parallel", "parallel", "arbitrary"),
            vmem_limit_bytes=vmem_limit,
        ),
        cost_estimate=cost,
    )(*args)

    if (N_p, K_p) != (N, K):
        out = out[:N, :K]
    return out


# ---------------------------------------------------------------------------
# Whole forward under one jit: pad -> kernel -> slice -> (blocked relayout)
# ---------------------------------------------------------------------------
@functools.partial(jax.jit, static_argnames=(
    "out_features", "act_type", "compute_dtype", "output_stays_blocked",
    "nbk", "bk"))
def _ipex_mlp_forward(x, weightT_p, bias2d_p, *, out_features, act_type,
                      compute_dtype, output_stays_blocked, nbk, bk):
    out2d = mlp_fc(x, weightT_p, bias2d_p, out_features=out_features,
                   act_type=act_type, compute_dtype=compute_dtype,
                   out_dtype=x.dtype)
    if not output_stays_blocked:
        # blocked.permute(0,2,1,3).reshape(N,K) == out2d -> skip the relayout
        return out2d
    N = out2d.shape[0]
    bn = get_blocking_factor(N, 48)
    # libxsmm blocked output layout [nbn, nbk, bn, bk]
    return out2d.reshape(N // bn, bn, nbk, bk).transpose(0, 2, 1, 3)


class IpexMLPLinearJax:
    """JAX/Pallas port of IpexMLPLinear (2-D input path)."""

    def __init__(self, C, K, key, bias=True, act_type=None,
                 output_stays_blocked=True, default_blocking=None,
                 use_bf16_compute=False):
        self.C, self.K = C, K
        self.output_stays_blocked = output_stays_blocked
        # NOTE(perf review): bf16 MXU compute is ~4x faster on all generations;
        # kept opt-in here so the default matches the torch module's
        # "compute in the input dtype" semantics.
        self.use_bf16_compute = use_bf16_compute
        if act_type is None:
            self.act_type = 0
        elif act_type == "relu":
            self.act_type = 1
        elif act_type == "sigmoid":
            self.act_type = 2
        else:
            raise RuntimeError("IpexMLPLinear: Unknown activation type %s" % act_type)

        # kaiming_uniform_(a=sqrt(5)) on a [K, C] tensor -> U(-1/sqrt(C), 1/sqrt(C))
        kw, kb = jax.random.split(key)
        bound = 1.0 / math.sqrt(C)
        self.weight = jax.random.uniform(kw, (K, C), jnp.float32,
                                         minval=-bound, maxval=bound)
        if bias:
            self.bias = jax.random.uniform(kb, (K,), jnp.float32,
                                           minval=-bound, maxval=bound)
        else:
            self.bias = None

        # fp32 output-layout blocking factors (same logic as the torch module)
        self.bc = get_blocking_factor(C, default_blocking)
        self.nbc = C // self.bc
        self.bk = get_blocking_factor(K, default_blocking)
        self.nbk = K // self.bk

        # --- one-time weight/bias prep hoisted out of the forward path -------
        self.C_p = _pad_C(C)
        self.K_p = _pad_K(K)
        wT = jnp.transpose(self.weight)                       # [C, K]
        if use_bf16_compute:
            wT = wT.astype(jnp.bfloat16)                      # bf16 weights in HBM
        if (self.C_p, self.K_p) != (C, K):
            wT = jnp.pad(wT, ((0, self.C_p - C), (0, self.K_p - K)))
        self.weightT_p = wT
        if self.bias is not None:
            b2 = self.bias.reshape(1, K).astype(jnp.float32)
            if self.K_p != K:
                b2 = jnp.pad(b2, ((0, 0), (0, self.K_p - K)))
            self.bias2d_p = b2
        else:
            self.bias2d_p = None

    # TODO(synk): bf16 VNNI (bc//2, 2) weight re-blocking, the 4-D pre-blocked
    # input path and the explicit odd-C "+1" padding are libxsmm layout details
    # with no TPU equivalent; only the 2-D-input forward is implemented.
    def __call__(self, x):
        compute_dtype = (jnp.bfloat16 if (self.use_bf16_compute
                                          or x.dtype == jnp.bfloat16) else None)
        return _ipex_mlp_forward(
            x, self.weightT_p, self.bias2d_p,
            out_features=self.K, act_type=self.act_type,
            compute_dtype=compute_dtype,
            output_stays_blocked=self.output_stays_blocked,
            nbk=self.nbk, bk=self.bk)


# ---------------------------------------------------------------------------
if __name__ == "__main__":
    key = jax.random.PRNGKey(0)
    k1, k2, k3, k4 = jax.random.split(key, 4)

    # 1) f32, bias + relu, blocked output layout (single reduction step)
    N, C, K = 96, 128, 128
    x = jax.random.normal(k1, (N, C), jnp.float32)
    mod = IpexMLPLinearJax(C, K, k2, bias=True, act_type="relu",
                           output_stays_blocked=True)
    out = jax.block_until_ready(mod(x))
    ref2d = jnp.maximum(x @ mod.weight.T + mod.bias, 0.0)
    bn = get_blocking_factor(N, 48)
    ref = ref2d.reshape(N // bn, bn, mod.nbk, mod.bk).transpose(0, 2, 1, 3)
    assert out.shape == (N // bn, mod.nbk, bn, mod.bk), out.shape
    assert jnp.allclose(out, ref, atol=2e-4, rtol=2e-4)

    # 2) f32, no bias, sigmoid, 2-D output, odd shapes (K=150 padded to 256)
    N, C, K = 40, 120, 150
    x = jax.random.normal(k3, (N, C), jnp.float32)
    mod2 = IpexMLPLinearJax(C, K, k2, bias=False, act_type="sigmoid",
                            output_stays_blocked=False)
    out2 = jax.block_until_ready(mod2(x))
    ref2 = jax.nn.sigmoid(x @ mod2.weight.T)
    assert out2.shape == (N, K), out2.shape
    assert jnp.allclose(out2, ref2, atol=2e-4, rtol=2e-4)

    # 3) bf16 MXU compute, bias + relu, multi-step reduction (C=640 -> 5 k-steps)
    N, C, K = 64, 640, 256
    x = jax.random.normal(k4, (N, C), jnp.float32)
    mod3 = IpexMLPLinearJax(C, K, k2, bias=True, act_type="relu",
                            output_stays_blocked=False, use_bf16_compute=True)
    out3 = jax.block_until_ready(mod3(x))
    ref3 = jnp.maximum(x @ mod3.weight.T + mod3.bias, 0.0)
    assert out3.shape == (N, K), out3.shape
    assert jnp.allclose(out3, ref3, atol=3e-2, rtol=3e-2)

    print("KERNEL_OK")
</pallas_src>

<mosaic_0001>
module attributes {stable_mosaic.version = 11 : i64} {
  func.func @_mlp_fc_kernel(%arg0: i32, %arg1: i32, %arg2: i32, %arg3: memref<48x128xf32, #tpu.memory_space<vmem>>, %arg4: memref<128x128xf32, #tpu.memory_space<vmem>>, %arg5: memref<1x128xf32, #tpu.memory_space<vmem>>, %arg6: memref<48x128xf32, #tpu.memory_space<vmem>>) attributes {dimension_semantics = [#tpu.dimension_semantics<parallel>, #tpu.dimension_semantics<parallel>, #tpu.dimension_semantics<arbitrary>], iteration_bounds = array<i64: 2, 1, 1>, scalar_prefetch = 0 : i64, scratch_operands = 0 : i64, tpu.core_type = #tpu.core_type<tc>, window_params = [{transform_indices = @transform_0, window_bounds = array<i64: 48, 128>}, {transform_indices = @transform_1, window_bounds = array<i64: 128, 128>}, {transform_indices = @transform_2, window_bounds = array<i64: 1, 128>}, {transform_indices = @transform_3, window_bounds = array<i64: 48, 128>}]} {
    %c0 = arith.constant 0 : index
    %c0_0 = arith.constant 0 : index
    %0 = vector.load %arg3[%c0, %c0_0] : memref<48x128xf32, #tpu.memory_space<vmem>>, vector<48x128xf32>
    %c0_1 = arith.constant 0 : index
    %c0_2 = arith.constant 0 : index
    %1 = vector.load %arg4[%c0_1, %c0_2] : memref<128x128xf32, #tpu.memory_space<vmem>>, vector<128x128xf32>
    %cst = arith.constant dense<0.000000e+00> : vector<48x128xf32>
    %2 = tpu.matmul %0, %1, %cst {dimension_numbers = #tpu.dot_dimension_numbers<[1], [0], [0], [1], [0, 0, 1, 1], [], []>} : vector<48x128xf32>, vector<128x128xf32>, vector<48x128xf32> -> vector<48x128xf32>
    %c0_i32 = arith.constant 0 : i32
    %3 = arith.cmpi eq, %arg2, %c0_i32 : i32
    %4 = arith.extui %3 : i1 to i32
    %c0_i32_3 = arith.constant 0 : i32
    %5 = arith.cmpi ne, %4, %c0_i32_3 : i32
    scf.if %5 {
      %c0_4 = arith.constant 0 : index
      %c0_5 = arith.constant 0 : index
      %6 = vector.load %arg5[%c0_4, %c0_5] : memref<1x128xf32, #tpu.memory_space<vmem>>, vector<1x128xf32>
      %7 = vector.broadcast %6 : vector<1x128xf32> to vector<48x128xf32>
      %8 = arith.addf %2, %7 : vector<48x128xf32>
      %cst_6 = arith.constant 0.000000e+00 : f32
      %9 = vector.broadcast %cst_6 : f32 to vector<48x128xf32>
      %10 = arith.maximumf %8, %9 : vector<48x128xf32>
      %c0_7 = arith.constant 0 : index
      %c0_8 = arith.constant 0 : index
      %11 = vector.load %arg6[%c0_7, %c0_8] : memref<48x128xf32, #tpu.memory_space<vmem>>, vector<48x128xf32>
      tpu.vector_store %arg6[%c0_7, %c0_8], %10 {strides = array<i32>} : memref<48x128xf32, #tpu.memory_space<vmem>>, vector<48x128xf32>,
    } else {
    }
    return
  }
  func.func @transform_0(%arg0: i32, %arg1: i32, %arg2: i32) -> (i32, i32) {
    %c0_i32 = arith.constant 0 : i32
    return %arg0, %arg2 : i32, i32
  }
  func.func @transform_1(%arg0: i32, %arg1: i32, %arg2: i32) -> (i32, i32) {
    %c0_i32 = arith.constant 0 : i32
    return %arg2, %arg1 : i32, i32
  }
  func.func @transform_2(%arg0: i32, %arg1: i32, %arg2: i32) -> (i32, i32) {
    %c0_i32 = arith.constant 0 : i32
    %c0_i32_0 = arith.constant 0 : i32
    return %c0_i32, %arg1 : i32, i32
  }
  func.func @transform_3(%arg0: i32, %arg1: i32, %arg2: i32) -> (i32, i32) {
    %c0_i32 = arith.constant 0 : i32
    return %arg0, %arg1 : i32, i32
  }
}

</mosaic_0001>

<llo_original>
// kernel: _ipex_mlp_forward.1
$region0: #{_ipex_mlp_forward.1}
  #allocation0 [shape = 'u32[]', space=smem, size = 0x4, offset = 0x4, fixed_abs, tag = 'smem constant byte address 0x4 - core index']
  #allocation1 [shape = 'u32[144,128]{1,0:T(1,128)}', space=vmem, size = 0x12000, scoped, tag = 'internal scratch']
  %s0 = inlined_call_operand.hbm [shape: f32[96,128], index: 0, kind: input, shape index: {}]
  %s1 = inlined_call_operand.hbm [shape: f32[128,128], index: 1, kind: input, shape index: {}]
  %s2 = inlined_call_operand.vmem [shape: f32[1,128], index: 2, kind: input, shape index: {}]
  %s3 = inlined_call_operand.vmem [shape: f32[96,128], index: 3, kind: output, shape index: {}]
  %s4 = sld [smem:[#allocation0]]
  $region57: #{_ipex_mlp_forward.1} parent=0
    _
  %s6 = ssub.s32 1, %s4
  %s7 = scalar_select 0, %s6, %s4
  $region1: #{_ipex_mlp_forward.1} parent=0
    #allocation2 [shape = 'u8[49152]{0}', space=vmem, size = 0xc000, scoped, tag = 'input window, operand 0']
    #allocation3 [shape = 's32[2]{0}', space=sflag, size = 0x8, scoped, tag = 'scoped memory for _ipex_mlp_forward.1']
    #allocation4 [shape = 'u8[65536]{0}', space=vmem, size = 0x10000, scoped, tag = 'input window, operand 1, single buffered']
    #allocation5 [shape = 's32[1]{0}', space=sflag, size = 0x4, scoped, tag = 'scoped memory for _ipex_mlp_forward.1']
    %8 = vsyncpa [#allocation3], 0
    %s9 = scalar_lea.sflag [#allocation3], 1
    %10 = vsyncpa %s9, 0
    %11 = vsyncpa [#allocation5], 0
    loop: start=0, step=1, limit=4
    $region2: #{_ipex_mlp_forward.1} parent=1 // loop_pre_header
      _
    $region3: #{_ipex_mlp_forward.1} parent=1 // loop_header
      %s13 = sphi 0, %s17
      %p14 = scmp.ge.s32.totalorder %s13, 4
      %s20 = sphi 0, %s39
      %s21 = sphi 0, %s35
      %s22 = sphi 0, %s31
      %s23 = sphi 0, %s20
      %s24 = sphi 0, %s21
      %s25 = sphi 0, %s22
      %s26 = sphi 0, %s23
      %s27 = sphi 0, %s24
      %s28 = sphi 0, %s25
      %s44 = sphi 0, %s46
      %s47 = sphi 0, %s44
      %s48 = sphi 0, %s47
      %s64 = sphi 0, %s48
      %s72 = sphi 0, %s74
      %s75 = sphi 0, %s72
      %s76 = sphi 0, %s75
      %s92 = sphi 0, %s76
      %s98 = sphi 0, %s100
      %s101 = sphi 0, %s98
      %s102 = sphi 0, %s101
      %s118 = sphi 0, %s102
      %s126 = sphi 0, %s128
      %s129 = sphi 0, %s126
      %s130 = sphi 0, %s129
      %s146 = sphi 0, %s130
    $region4: #{_ipex_mlp_forward.1} parent=1 // loop_header_branch
      %16 = sbr.rel (%p14) target = $region8
    $region5: #{_ipex_mlp_forward.1} parent=1 // loop_body
      %s18 = ssub.s32 %s13, 1
      %s19 = ssub.s32 %s13, 2
      %s29 = sadd.s32 1, %s22
      %p30 = scmp.ge.s32.totalorder %s29, 1
      %s31 = scalar_select %p30, 0, %s29
      %s32 = sadd.s32 1, %s21
      %s33 = scalar_select %p30, %s32, %s21
      %p34 = scmp.ge.s32.totalorder %s33, 1
      %s35 = scalar_select %p34, 0, %s33
      %s36 = sadd.s32 1, %s20
      %s37 = scalar_select %p34, %s36, %s20
      %p38 = scmp.ge.s32.totalorder %s37, 2
      %s39 = scalar_select %p38, 0, %s37
      %s40 = ssub.s32 %s20, %s39
      %s41 = ssub.s32 %s22, %s31
      %s42 = sor.u32 %s40, %s41
      %p43 = scmp.eq.s32.totalorder %s42, 0
      %s45 = sadd.s32 %s44, 1
      %s46 = scalar_select %p43, %s44, %s45
      %p49 = pneg %p43
      %p50 = scmp.eq.s32.totalorder %s13, 1
      %p51 = por %p49, %p50
      %p52 = scmp.ne.s32.totalorder %s44, %s47
      %p53 = scmp.eq.s32.totalorder %s13, 0
      %p54 = por %p52, %p53
      %p55 = scmp.ne.s32.totalorder %s44, %s47
      %p56 = scmp.eq.s32.totalorder %s18, 1
      %p57 = por %p55, %p56
      %p58 = scmp.ne.s32.totalorder %s47, %s48
      %p59 = scmp.eq.s32.totalorder %s18, 0
      %p60 = por %p58, %p59
      %p61 = scmp.ne.s32.totalorder %s47, %s48
      %p62 = scmp.eq.s32.totalorder %s19, 1
      %p63 = por %p61, %p62
      %p65 = scmp.ne.s32.totalorder %s48, %s64
      %p66 = scmp.eq.s32.totalorder %s19, 0
      %p67 = por %p65, %p66
      %s68 = ssub.s32 %s22, %s31
      %s69 = ssub.s32 %s21, %s35
      %s70 = sor.u32 %s68, %s69
      %p71 = scmp.eq.s32.totalorder %s70, 0
      %s73 = sadd.s32 %s72, 1
      %s74 = scalar_select %p71, %s72, %s73
      %p77 = pneg %p71
      %p78 = scmp.eq.s32.totalorder %s13, 1
      %p79 = por %p77, %p78
      %p80 = scmp.ne.s32.totalorder %s72, %s75
      %p81 = scmp.eq.s32.totalorder %s13, 0
      %p82 = por %p80, %p81
      %p83 = scmp.ne.s32.totalorder %s72, %s75
      %p84 = scmp.eq.s32.totalorder %s18, 1
      %p85 = por %p83, %p84
      %p86 = scmp.ne.s32.totalorder %s75, %s76
      %p87 = scmp.eq.s32.totalorder %s18, 0
      %p88 = por %p86, %p87
      %p89 = scmp.ne.s32.totalorder %s75, %s76
      %p90 = scmp.eq.s32.totalorder %s19, 1
      %p91 = por %p89, %p90
      %p93 = scmp.ne.s32.totalorder %s76, %s92
      %p94 = scmp.eq.s32.totalorder %s19, 0
      %p95 = por %p93, %p94
      %s96 = ssub.s32 %s21, %s35
      %p97 = scmp.eq.s32.totalorder %s96, 0
      %s99 = sadd.s32 %s98, 1
      %s100 = scalar_select %p97, %s98, %s99
      %p103 = pneg %p97
      %p104 = scmp.eq.s32.totalorder %s13, 1
      %p105 = por %p103, %p104
      %p106 = scmp.ne.s32.totalorder %s98, %s101
      %p107 = scmp.eq.s32.totalorder %s13, 0
      %p108 = por %p106, %p107
      %p109 = scmp.ne.s32.totalorder %s98, %s101
      %p110 = scmp.eq.s32.totalorder %s18, 1
      %p111 = por %p109, %p110
      %p112 = scmp.ne.s32.totalorder %s101, %s102
      %p113 = scmp.eq.s32.totalorder %s18, 0
      %p114 = por %p112, %p113
      %p115 = scmp.ne.s32.totalorder %s101, %s102
      %p116 = scmp.eq.s32.totalorder %s19, 1
      %p117 = por %p115, %p116
      %p119 = scmp.ne.s32.totalorder %s102, %s118
      %p120 = scmp.eq.s32.totalorder %s19, 0
      %p121 = por %p119, %p120
      %s122 = ssub.s32 %s20, %s39
      %s123 = ssub.s32 %s21, %s35
      %s124 = sor.u32 %s122, %s123
      %p125 = scmp.eq.s32.totalorder %s124, 0
      %s127 = sadd.s32 %s126, 1
      %s128 = scalar_select %p125, %s126, %s127
      %p131 = pneg %p125
      %p132 = scmp.eq.s32.totalorder %s13, 1
      %p133 = por %p131, %p132
      %p134 = scmp.ne.s32.totalorder %s126, %s129
      %p135 = scmp.eq.s32.totalorder %s13, 0
      %p136 = por %p134, %p135
      %p137 = scmp.ne.s32.totalorder %s126, %s129
      %p138 = scmp.eq.s32.totalorder %s18, 1
      %p139 = por %p137, %p138
      %p140 = scmp.ne.s32.totalorder %s129, %s130
      %p141 = scmp.eq.s32.totalorder %s18, 0
      %p142 = por %p140, %p141
      %p143 = scmp.ne.s32.totalorder %s129, %s130
      %p144 = scmp.eq.s32.totalorder %s19, 1
      %p145 = por %p143, %p144
      %p147 = scmp.ne.s32.totalorder %s130, %s146
      %p148 = scmp.eq.s32.totalorder %s19, 0
      %p149 = por %p147, %p148
      %p150 = scmp.le.s32.totalorder 1, %s13
      %p151 = scmp.lt.s32.totalorder %s13, 3
      %p152 = pnand %p150, %p151
      %p153 = pneg %p152
      // Predicated region
      $region9: #{_ipex_mlp_forward.1} parent=5 // pred_check
        _
      $region10: #{_ipex_mlp_forward.1} parent=5 // pred_check_branch
        %155 = sbr.rel (%p152) target = $region12
      $region11: #{_ipex_mlp_forward.1} parent=5 // pred_region
        %s156 = ssub.s32 %s13, 1
        // Predicated region
        $region13: #{_ipex_mlp_forward.1} parent=11 // pred_check
          %p157 = pneg %p88
        $region14: #{_ipex_mlp_forward.1} parent=11 // pred_check_branch
          %159 = sbr.rel (%p157) target = $region16
        $region15: #{_ipex_mlp_forward.1} parent=11 // pred_region
          %s160 = smul.u32 16, %s25
          %s162 = ssub.s32 2048, 2048
          %163 = vsyncadd [#allocation5], %s162
          %s164 = sadd.s32 %s24, %s160
          %s165 = smul.addr %s164, 128
          %s166 = scalar_lea.hbm %s1, %s165
          %s167 = sshll.u32 [#allocation4], 4
          %s168 = int_to_ptr.vmem [resolvable:$true] %s167
          %173 = dma.hbm_to_vmem [thread:$0]  %s166, 2048, %s168, [#allocation5], 128, 128, 8
        $region16: #{_ipex_mlp_forward.1} parent=11 // pred_fallthru
          _
        // Predicated region
        $region17: #{_ipex_mlp_forward.1} parent=11 // pred_check
          %p174 = pneg %p114
        $region18: #{_ipex_mlp_forward.1} parent=11 // pred_check_branch
          %176 = sbr.rel (%p174) target = $region20
        $region19: #{_ipex_mlp_forward.1} parent=11 // pred_region
          %p177 = scmp.lt.s32.totalorder %s24, 0
          %s178 = scalar_select %p177, %s24, 0
          %s179 = scalar_lea.vmem %s2, %s178
        $region20: #{_ipex_mlp_forward.1} parent=11 // pred_fallthru
          _
      $region12: #{_ipex_mlp_forward.1} parent=5 // pred_fallthru
        _
      %p180 = scmp.lt.s32.totalorder %s13, 2
      // Predicated region
      $region21: #{_ipex_mlp_forward.1} parent=5 // pred_check
        %p181 = pneg %p180
      $region22: #{_ipex_mlp_forward.1} parent=5 // pred_check_branch
        %183 = sbr.rel (%p181) target = $region24
      $region23: #{_ipex_mlp_forward.1} parent=5 // pred_region
        // Predicated region
        $region25: #{_ipex_mlp_forward.1} parent=23 // pred_check
          %p184 = pneg %p54
        $region26: #{_ipex_mlp_forward.1} parent=23 // pred_check_branch
          %186 = sbr.rel (%p184) target = $region28
        $region27: #{_ipex_mlp_forward.1} parent=23 // pred_region
          %s187 = sand.u32 %s44, 1
          %s188 = scalar_lea.sflag [#allocation3], %s187
          %s189 = sand.u32 %s44, 1
          %s190 = smul.addr %s189, 48
          %s191 = scalar_lea.vmem [#allocation2], %s190
          %s192 = smul.u32 6, %s20
          %s194 = ssub.s32 768, 768
          %195 = vsyncadd %s188, %s194
          %s196 = sadd.s32 %s22, %s192
          %s197 = smul.addr %s196, 128
          %s198 = scalar_lea.hbm %s0, %s197
          %s199 = sshll.u32 %s191, 4
          %s200 = int_to_ptr.vmem [resolvable:$true] %s199
          %205 = dma.hbm_to_vmem [thread:$0]  %s198, 768, %s200, %s188, 128, 128, 8
        $region28: #{_ipex_mlp_forward.1} parent=23 // pred_fallthru
          _
      $region24: #{_ipex_mlp_forward.1} parent=5 // pred_fallthru
        _
      %p206 = scmp.le.s32.totalorder 1, %s13
      %p207 = scmp.lt.s32.totalorder %s13, 3
      %p208 = pnand %p206, %p207
      %p209 = pneg %p208
      // Predicated region
      $region29: #{_ipex_mlp_forward.1} parent=5 // pred_check
        _
      $region30: #{_ipex_mlp_forward.1} parent=5 // pred_check_branch
        %211 = sbr.rel (%p208) target = $region32
      $region31: #{_ipex_mlp_forward.1} parent=5 // pred_region
        %s212 = ssub.s32 %s13, 1
        %s213 = sand.u32 %s47, 1
        %s214 = scalar_lea.sflag [#allocation3], %s213
        %s215 = sand.u32 %s47, 1
        %s216 = smul.addr %s215, 48
        %s217 = scalar_lea.vmem [#allocation2], %s216
        // Predicated region
        $region33: #{_ipex_mlp_forward.1} parent=31 // pred_check
          %p218 = pneg %p60
        $region34: #{_ipex_mlp_forward.1} parent=31 // pred_check_branch
          %220 = sbr.rel (%p218) target = $region36
        $region35: #{_ipex_mlp_forward.1} parent=31 // pred_region
          %221 = dma.done %s214, 768
        $region36: #{_ipex_mlp_forward.1} parent=31 // pred_fallthru
          _
        // Predicated region
        $region37: #{_ipex_mlp_forward.1} parent=31 // pred_check
          %p222 = pneg %p88
        $region38: #{_ipex_mlp_forward.1} parent=31 // pred_check_branch
          %224 = sbr.rel (%p222) target = $region40
        $region39: #{_ipex_mlp_forward.1} parent=31 // pred_region
          %225 = dma.done [#allocation5], 2048
        $region40: #{_ipex_mlp_forward.1} parent=31 // pred_fallthru
          _
        %s226 = sand.u32 %s47, 1
        %s227 = scalar_lea.sflag [#allocation3], %s226
        %s228 = sand.u32 %s47, 1
        %s229 = smul.addr %s228, 48
        %s230 = scalar_lea.vmem [#allocation2], %s229
        %p231 = pneg %p60
        %p232 = pneg %p57
        %p233 = pneg %p88
        %p234 = pneg %p85
        %p235 = scmp.lt.s32.totalorder %s24, 0
        %s236 = scalar_select %p235, %s24, 0
        %s237 = scalar_lea.vmem %s2, %s236
        %p238 = pneg %p114
        %p239 = pneg %p111
        %p240 = pneg %p142
        %p241 = pneg %p139
        %s242 = smul.u32 6, %s23
        %p243 = scmp.lt.s32.totalorder %s242, 11
        %s244 = scalar_select %p243, %s242, 11
        %p245 = scmp.lt.s32.totalorder %s24, 0
        %s246 = scalar_select %p245, %s24, 0
        %s247 = sadd.s32 %s246, %s244
        %s248 = smul.addr %s247, 8
        %s249 = scalar_lea.vmem %s3, %s248
        %s250 = smul.u32 6, %s23
        %s251 = smul.u32 16, %s25
        %p252 = scmp.lt.s32.totalorder %s24, 0
        %s253 = scalar_select %p252, %s24, 0
        %s254 = scalar_lea.vmem %s2, %s253
        %s255 = smul.u32 6, %s23
        %p256 = scmp.lt.s32.totalorder %s255, 11
        %s257 = scalar_select %p256, %s255, 11
        %p258 = scmp.lt.s32.totalorder %s24, 0
        %s259 = scalar_select %p258, %s24, 0
        %s260 = sadd.s32 %s259, %s257
        %s261 = smul.addr %s260, 8
        %s262 = scalar_lea.vmem %s3, %s261
        %s263 = smul.u32 6, %s23
        %v264 = vld [vmem:[%s217] sm:$0xff]
        %v265 = vld [vmem:[%s217 + $0x8] sm:$0xff]
        %v266 = vld [vmem:[%s217 + $0x10] sm:$0xff]
        %v267 = vld [vmem:[%s217 + $0x18] sm:$0xff]
        %v268 = vld [vmem:[%s217 + $0x20] sm:$0xff]
        %v269 = vld [vmem:[%s217 + $0x28] sm:$0xff]
        %v270 = vld [vmem:[#allocation4] sm:$0xff]
        %v271 = vld [vmem:[#allocation4 + $0x8] sm:$0xff]
        %v272 = vld [vmem:[#allocation4 + $0x10] sm:$0xff]
        %v273 = vld [vmem:[#allocation4 + $0x18] sm:$0xff]
        %v274 = vld [vmem:[#allocation4 + $0x20] sm:$0xff]
        %v275 = vld [vmem:[#allocation4 + $0x28] sm:$0xff]
        %v276 = vld [vmem:[#allocation4 + $0x30] sm:$0xff]
        %v277 = vld [vmem:[#allocation4 + $0x38] sm:$0xff]
        %v278 = vld [vmem:[#allocation4 + $0x40] sm:$0xff]
        %v279 = vld [vmem:[#allocation4 + $0x48] sm:$0xff]
        %v280 = vld [vmem:[#allocation4 + $0x50] sm:$0xff]
        %v281 = vld [vmem:[#allocation4 + $0x58] sm:$0xff]
        %v282 = vld [vmem:[#allocation4 + $0x60] sm:$0xff]
        %v283 = vld [vmem:[#allocation4 + $0x68] sm:$0xff]
        %v284 = vld [vmem:[#allocation4 + $0x70] sm:$0xff]
        %v285 = vld [vmem:[#allocation4 + $0x78] sm:$0xff]
        %p286 = scmp.eq.s32.totalorder %s25, 0
        // Predicated region
        $region41: #{_ipex_mlp_forward.1} parent=31 // pred_check
          %p287 = pneg %p286
        $region42: #{_ipex_mlp_forward.1} parent=31 // pred_check_branch
          %289 = sbr.rel (%p287) target = $region44
        $region43: #{_ipex_mlp_forward.1} parent=31 // pred_region
          %v290 = vld [vmem:[%s254] sm:$0x1]
          %v292 = vlaneseq
          %v293 = vshrl.u32 %v292, 7
          %v294 = vsub.s32 0, %v293
          %v295 = vrot.slane %v290, %v294
          %297 = vmatprep.subr.mxu0 0.0
          %298 = vmatpush1.msra.mxu0 %v270
          %299 = vmatprep.subr.mxu0 0.0
          %300 = vmatpush1.msra.mxu0 %v271
          %301 = vmatprep.subr.mxu0 0.0
          %302 = vmatpush1.msra.mxu0 %v272
          %303 = vmatprep.subr.mxu0 0.0
          %304 = vmatpush1.msra.mxu0 %v273
          %305 = vmatprep.subr.mxu0 0.0
          %306 = vmatpush1.msra.mxu0 %v274
          %307 = vmatprep.subr.mxu0 0.0
          %308 = vmatpush1.msra.mxu0 %v275
          %309 = vmatprep.subr.mxu0 0.0
          %310 = vmatpush1.msra.mxu0 %v276
          %311 = vmatprep.subr.mxu0 0.0
          %312 = vmatpush1.msra.mxu0 %v277
          %313 = vmatprep.subr.mxu0 0.0
          %314 = vmatpush1.msra.mxu0 %v278
          %315 = vmatprep.subr.mxu0 0.0
          %316 = vmatpush1.msra.mxu0 %v279
          %317 = vmatprep.subr.mxu0 0.0
          %318 = vmatpush1.msra.mxu0 %v280
          %319 = vmatprep.subr.mxu0 0.0
          %320 = vmatpush1.msra.mxu0 %v281
          %321 = vmatprep.subr.mxu0 0.0
          %322 = vmatpush1.msra.mxu0 %v282
          %323 = vmatprep.subr.mxu0 0.0
          %324 = vmatpush1.msra.mxu0 %v283
          %325 = vmatprep.subr.mxu0 0.0
          %326 = vmatpush1.msra.mxu0 %v284
          %327 = vmatprep.subr.mxu0 0.0
          %328 = vmatpush1.msra.mxu0 %v285
          %329 = vmatprep.subr.mxu0 0.0
          %330 = vmatpush1.msra.mxu0 0.0
          %331 = vmatprep.subr.mxu0 0.0
          %332 = vmatpush1.msra.mxu0 0.0
          %333 = vmatprep.subr.mxu0 0.0
          %334 = vmatpush1.msra.mxu0 0.0
          %335 = vmatprep.subr.mxu0 0.0
          %336 = vmatpush1.msra.mxu0 0.0
          %337 = vmatprep.subr.mxu0 0.0
          %338 = vmatpush1.msra.mxu0 0.0
          %339 = vmatprep.subr.mxu0 0.0
          %340 = vmatpush1.msra.mxu0 0.0
          %341 = vmatprep.subr.mxu0 0.0
          %342 = vmatpush1.msra.mxu0 0.0
          %343 = vmatprep.subr.mxu0 0.0
          %344 = vmatpush1.msra.mxu0 0.0
          %345 = vmatprep.subr.mxu0 0.0
          %346 = vmatpush1.msra.mxu0 0.0
          %347 = vmatprep.subr.mxu0 0.0
          %348 = vmatpush1.msra.mxu0 0.0
          %349 = vmatprep.subr.mxu0 0.0
          %350 = vmatpush1.msra.mxu0 0.0
          %351 = vmatprep.subr.mxu0 0.0
          %352 = vmatpush1.msra.mxu0 0.0
          %353 = vmatprep.subr.mxu0 0.0
          %354 = vmatpush1.msra.mxu0 0.0
          %355 = vmatprep.subr.mxu0 0.0
          %356 = vmatpush1.msra.mxu0 0.0
          %357 = vmatprep.subr.mxu0 0.0
          %358 = vmatpush1.msra.mxu0 0.0
          %359 = vmatprep.subr.mxu0 0.0
          %360 = vmatpush1.msra.mxu0 0.0
          %361 = vmatprep.mubr.f32.mxu0 0.0
          %362 = vmatmul.mubr.f32.gmra.mrb[0].mxu0 %v264
          %v363 = vpop.f32.mrb[0].mxu0
          %v364 = vadd.f32 %v295, %v363
          %v365 = vpop.f32.mrb[0].mxu0
          %366 = vmatprep.mubr.f32.mxu0 0.0
          %367 = vmatmul.mubr.f32.gmra.mrb[0].mxu0 %v265
          %v368 = vpop.f32.mrb[0].mxu0
          %v369 = vadd.f32 %v295, %v368
          %v370 = vpop.f32.mrb[0].mxu0
          %371 = vmatprep.mubr.f32.mxu0 0.0
          %372 = vmatmul.mubr.f32.gmra.mrb[0].mxu0 %v266
          %v373 = vpop.f32.mrb[0].mxu0
          %v374 = vadd.f32 %v295, %v373
          %v375 = vpop.f32.mrb[0].mxu0
          %376 = vmatprep.mubr.f32.mxu0 0.0
          %377 = vmatmul.mubr.f32.gmra.mrb[0].mxu0 %v267
          %v378 = vpop.f32.mrb[0].mxu0
          %v379 = vadd.f32 %v295, %v378
          %v380 = vpop.f32.mrb[0].mxu0
          %381 = vmatprep.mubr.f32.mxu0 0.0
          %382 = vmatmul.mubr.f32.gmra.mrb[0].mxu0 %v268
          %v383 = vpop.f32.mrb[0].mxu0
          %v384 = vadd.f32 %v295, %v383
          %v385 = vpop.f32.mrb[0].mxu0
          %386 = vmatprep.mubr.f32.mxu0 0.0
          %387 = vmatmul.mubr.f32.gmra.mrb[0].mxu0 %v269
          %v388 = vpop.f32.mrb[0].mxu0
          %v389 = vadd.f32 %v295, %v388
          %v390 = vpop.f32.mrb[0].mxu0
          %391 = vdwg.mxu0
          %v392 = vmax.f32 %v364, 0.0
          %v393 = vmax.f32 %v369, 0.0
          %v394 = vmax.f32 %v374, 0.0
          %v395 = vmax.f32 %v379, 0.0
          %v396 = vmax.f32 %v384, 0.0
          %v397 = vmax.f32 %v389, 0.0
          %398 = vst [vmem:[%s262] sm:$0xff] %v392
          %399 = vst [vmem:[%s262 + $0x8] sm:$0xff] %v393
          %400 = vst [vmem:[%s262 + $0x10] sm:$0xff] %v394
          %401 = vst [vmem:[%s262 + $0x18] sm:$0xff] %v395
          %402 = vst [vmem:[%s262 + $0x20] sm:$0xff] %v396
          %403 = vst [vmem:[%s262 + $0x28] sm:$0xff] %v397
        $region44: #{_ipex_mlp_forward.1} parent=31 // pred_fallthru
          _
        %s404 = smul.u32 6, %s23
        %p405 = scmp.lt.s32.totalorder %s404, 11
        %s406 = scalar_select %p405, %s404, 11
        %p407 = scmp.lt.s32.totalorder %s24, 0
        %s408 = scalar_select %p407, %s24, 0
        %s409 = sadd.s32 %s408, %s406
        %s410 = smul.addr %s409, 8
        %s411 = scalar_lea.vmem %s3, %s410
        // Predicated region
        $region45: #{_ipex_mlp_forward.1} parent=31 // pred_check
          %p412 = pneg %p139
        $region46: #{_ipex_mlp_forward.1} parent=31 // pred_check_branch
          %414 = sbr.rel (%p412) target = $region48
        $region47: #{_ipex_mlp_forward.1} parent=31 // pred_region
          %s415 = smul.u32 6, %s23
        $region48: #{_ipex_mlp_forward.1} parent=31 // pred_fallthru
          _
      $region32: #{_ipex_mlp_forward.1} parent=5 // pred_fallthru
        _
      %p416 = scmp.le.s32.totalorder 2, %s13
      // Predicated region
      $region49: #{_ipex_mlp_forward.1} parent=5 // pred_check
        %p417 = pneg %p416
      $region50: #{_ipex_mlp_forward.1} parent=5 // pred_check_branch
        %419 = sbr.rel (%p417) target = $region52
      $region51: #{_ipex_mlp_forward.1} parent=5 // pred_region
        %s420 = ssub.s32 %s13, 2
        // Predicated region
        $region53: #{_ipex_mlp_forward.1} parent=51 // pred_check
          %p421 = pneg %p145
        $region54: #{_ipex_mlp_forward.1} parent=51 // pred_check_branch
          %423 = sbr.rel (%p421) target = $region56
        $region55: #{_ipex_mlp_forward.1} parent=51 // pred_region
          %s424 = smul.u32 6, %s26
          %p425 = scmp.lt.s32.totalorder %s424, 11
          %s426 = scalar_select %p425, %s424, 11
          %p427 = scmp.lt.s32.totalorder %s27, 0
          %s428 = scalar_select %p427, %s27, 0
          %s429 = sadd.s32 %s428, %s426
          %s430 = smul.addr %s429, 8
          %s431 = scalar_lea.vmem %s3, %s430
        $region56: #{_ipex_mlp_forward.1} parent=51 // pred_fallthru
          _
      $region52: #{_ipex_mlp_forward.1} parent=5 // pred_fallthru
        _
    $region6: #{_ipex_mlp_forward.1} parent=1 // loop_footer
      %s17 = sadd.s32 1, %s13
    $region7: #{_ipex_mlp_forward.1} parent=1 // loop_footer_branch
      %12 = sbr.rel target = $region3
    $region8: #{_ipex_mlp_forward.1} parent=1 // loop_exit
      _
    %432 = vsyncpa [#allocation3], 1
    %s433 = scalar_lea.sflag [#allocation3], 1
    %434 = vsyncpa %s433, 1
    %435 = vsyncpa [#allocation5], 1

</llo_original>
